<compile_context>
chip_gen: v6e
topology: v6e:2x2x1
jax: 0.10.0
libtpu: 0.0.40
codegen_flags: <defaults>
</compile_context>

<pallas_src>
import functools

import numpy as np
import jax
import jax.numpy as jnp
from jax.experimental import pallas as pl
from jax.experimental.pallas import tpu as pltpu


_MARGIN = 1.0      # nn.TripletMarginWithDistanceLoss default margin
_PD_EPS = 1e-6     # nn.PairwiseDistance default eps


def _round_up(x, m):
    return ((x + m - 1) // m) * m


def _lbgat_kernel(y_ref, lo_ref, la_ref, ln_ref, an_ref, po_ref, ne_ref,
                  out_ref, *, n_valid, tm):
    """One row tile of all four LBGAT loss terms -> 4 partial sums.

    y_ref : (TM, 1)  int32 labels
    lo_ref: (TM, C)  logits_orig        (native dtype, cast to f32 in-kernel)
    la_ref: (TM, C)  logits_adv
    ln_ref: (TM, C)  logits_natural
    an_ref: (TM, D)  x4s_natural (triplet anchor)
    po_ref: (TM, D)  x4s_adv     (triplet positive)
    ne_ref: (TM, D)  x4s_neg     (triplet negative)
    out_ref: (1, 1, 128) partial sums for this grid step:
             lane 0 = sum_i CE_i
             lane 1 = sum_{i,c} (logits_orig - logits_adv)^2
             lane 2 = sum_{i,c} KL pointwise
             lane 3 = sum_i triplet_i
    """
    i = pl.program_id(0)

    # Row-validity mask: OOB / padded tail rows contribute 0.
    row = jax.lax.broadcasted_iota(jnp.int32, (tm, 1), 0) + i * tm
    valid_b = row < n_valid                               # (TM, 1) bool
    valid = valid_b.astype(jnp.float32)                   # (TM, 1) f32

    # Load, upcast, and sanitize BEFORE any exp/log/sqrt so garbage bits in the
    # partial last block can never produce inf/NaN that survives the mask.
    def ld(ref):
        return jnp.where(valid_b, ref[...].astype(jnp.float32), 0.0)

    lo = ld(lo_ref)
    la = ld(la_ref)
    ln = ld(ln_ref)
    an = ld(an_ref)
    po = ld(po_ref)
    ne = ld(ne_ref)
    c = lo.shape[-1]

    # --- CrossEntropy(logits_orig, y): logsumexp(row) - logit[row, y] ------
    m_o = jnp.max(lo, axis=-1, keepdims=True)
    z_o = lo - m_o
    lse_o = m_o + jnp.log(jnp.sum(jnp.exp(z_o), axis=-1, keepdims=True))
    lane = jax.lax.broadcasted_iota(jnp.int32, (tm, c), 1)
    onehot = (lane == y_ref[...]).astype(jnp.float32)     # in-kernel one-hot
    logit_y = jnp.sum(lo * onehot, axis=-1, keepdims=True)
    ce_part = jnp.sum((lse_o - logit_y) * valid)

    # --- MSE(logits_orig, logits_adv): sum of squared diffs -----------------
    # (sanitized invalid rows are 0-0, so they contribute exactly 0)
    diff = lo - la
    mse_part = jnp.sum(diff * diff)

    # --- KLDiv(log_softmax(adv) || softmax(natural)), reduction='sum' ------
    m_n = jnp.max(ln, axis=-1, keepdims=True)
    z_n = ln - m_n
    e_n = jnp.exp(z_n)
    s_n = jnp.sum(e_n, axis=-1, keepdims=True)
    logp_n = z_n - jnp.log(s_n)
    p_n = e_n / s_n

    m_a = jnp.max(la, axis=-1, keepdims=True)
    z_a = la - m_a
    logp_a = z_a - jnp.log(jnp.sum(jnp.exp(z_a), axis=-1, keepdims=True))

    kl_row = jnp.sum(p_n * (logp_n - logp_a), axis=-1, keepdims=True)
    kl_part = jnp.sum(kl_row * valid)

    # --- Triplet(anchor=x4s_natural, pos=x4s_adv, neg=x4s_neg) -------------
    v_ap = an - po + _PD_EPS
    v_an = an - ne + _PD_EPS
    d_ap = jnp.sqrt(jnp.sum(v_ap * v_ap, axis=-1, keepdims=True))
    d_an = jnp.sqrt(jnp.sum(v_an * v_an, axis=-1, keepdims=True))
    trip_row = jnp.maximum(d_ap - d_an + _MARGIN, 0.0)
    trip_part = jnp.sum(trip_row * valid)

    # --- lane-dense partial-sum row for this grid step ----------------------
    out_lane = jax.lax.broadcasted_iota(jnp.int32, (1, 1, 128), 2)
    sel = lambda k: (out_lane == k).astype(jnp.float32)
    out_ref[...] = (ce_part * sel(0) + mse_part * sel(1)
                    + kl_part * sel(2) + trip_part * sel(3))


def lbgat_loss(out_adv, out_natural, out_neg, out_orig, y, *, beta=1.0, tm=None):
    """Forward pass of LBGATLoss (same signature / semantics as the torch module)."""
    _features_adv, x4s_adv, logits_adv = out_adv
    _features_nat, x4s_natural, logits_natural = out_natural
    _features_neg, x4s_neg, _logits_neg = out_neg
    _features_orig, _x4s_orig, logits_orig = out_orig

    # Stream in the producer's native dtype (no f32 upcast copies in HBM).
    logits_orig = jnp.asarray(logits_orig)
    logits_adv = jnp.asarray(logits_adv)
    logits_natural = jnp.asarray(logits_natural)
    x4s_natural = jnp.asarray(x4s_natural)
    x4s_adv = jnp.asarray(x4s_adv)
    x4s_neg = jnp.asarray(x4s_neg)
    y = jnp.asarray(y, jnp.int32)

    n, c = logits_orig.shape
    d = x4s_natural.shape[-1]

    streams = (logits_orig, logits_adv, logits_natural,
               x4s_natural, x4s_adv, x4s_neg)

    # Sublane granule for the row tile: f32/i32 -> 8, bf16/f16 -> 16, 8-bit -> 32.
    granule = max([8] + [32 // a.dtype.itemsize for a in streams])

    # --- Generation-aware VMEM budget ---------------------------------------
    try:
        vmem_cap = int(pltpu.get_tpu_info().vmem_capacity_bytes)
    except Exception:
        vmem_cap = 64 * 1024 * 1024        # conservative (v7x-sized) fallback
    # v7x (64 MiB): ~48 MiB limit; v5e/v6e (128 MiB): 64 MiB limit.
    vmem_limit = max(32 * 1024 * 1024,
                     min(vmem_cap - 16 * 1024 * 1024, 64 * 1024 * 1024))

    # Per-row footprint: double-buffered input blocks + f32 temporaries
    # (z_o, e_n, p_n, logp_*, diff, v_ap, v_an, ... — rough but tile-aware).
    in_bytes_row = sum(a.dtype.itemsize * a.shape[-1] for a in streams) + 4
    temp_bytes_row = 4 * (8 * c + 4 * d + 8)
    per_row = 2 * in_bytes_row + temp_bytes_row
    budget = int(vmem_limit * 0.7)

    # Only a batch smaller than one sublane granule gets (a few) padded rows;
    # otherwise no pad copy at all — the partial tail block is masked in-kernel.
    n_rows = n
    pad_rows = 0
    if n < granule:
        pad_rows = granule - n
        n_rows = granule
    n_floor = max(granule, (n_rows // granule) * granule)

    if tm is None:
        tm = budget // max(per_row, 1)
        tm = min(tm, 2048)
    tm = max(granule, (int(tm) // granule) * granule)
    tm = min(tm, n_floor)
    g = pl.cdiv(n_rows, tm)

    y2 = y.reshape(n, 1)
    lo, la, ln = logits_orig, logits_adv, logits_natural
    fa, fp, fn = x4s_natural, x4s_adv, x4s_neg
    if pad_rows:
        padf = lambda a: jnp.pad(a, ((0, pad_rows), (0, 0)))
        y2 = padf(y2)
        lo, la, ln, fa, fp, fn = (padf(a) for a in (lo, la, ln, fa, fp, fn))

    # Advisory cost estimate so XLA can overlap this mem-bound kernel.
    bytes_accessed = (sum(int(a.size) * a.dtype.itemsize for a in streams)
                      + n * 4 + g * 128 * 4)
    cost = pl.CostEstimate(flops=int(n) * (20 * c + 12 * d),
                           transcendentals=int(n) * (3 * c + 5),
                           bytes_accessed=int(bytes_accessed))

    kernel = functools.partial(_lbgat_kernel, n_valid=n, tm=tm)
    partials = pl.pallas_call(
        kernel,
        out_shape=jax.ShapeDtypeStruct((g, 1, 128), jnp.float32),
        grid_spec=pltpu.PrefetchScalarGridSpec(
            num_scalar_prefetch=0,
            grid=(g,),
            in_specs=[
                pl.BlockSpec((tm, 1), lambda i: (i, 0)),   # labels
                pl.BlockSpec((tm, c), lambda i: (i, 0)),   # logits_orig
                pl.BlockSpec((tm, c), lambda i: (i, 0)),   # logits_adv
                pl.BlockSpec((tm, c), lambda i: (i, 0)),   # logits_natural
                pl.BlockSpec((tm, d), lambda i: (i, 0)),   # x4s_natural (anchor)
                pl.BlockSpec((tm, d), lambda i: (i, 0)),   # x4s_adv     (positive)
                pl.BlockSpec((tm, d), lambda i: (i, 0)),   # x4s_neg     (negative)
            ],
            out_specs=pl.BlockSpec((1, 1, 128), lambda i: (i, 0, 0)),
        ),
        compiler_params=pltpu.CompilerParams(
            dimension_semantics=("parallel",),
            vmem_limit_bytes=int(vmem_limit)),
        cost_estimate=cost,
    )(y2, lo, la, ln, fa, fp, fn)

    sums = jnp.sum(partials[:, 0, :], axis=0)
    loss_ce = sums[0] / n + sums[1] / (n * c)   # CE mean + MSE mean
    loss_kl = sums[2] / n                       # (1/batch) * KLDiv(reduction='sum')
    loss_triplet = sums[3] / n                  # triplet mean
    return loss_ce + loss_triplet + beta * loss_kl


def _reference_lbgat(logits_orig, logits_adv, logits_natural,
                     x4s_natural, x4s_adv, x4s_neg, y, beta=1.0):
    """Pure numpy (float64) reference of the torch forward."""
    to64 = lambda a: np.asarray(jnp.asarray(a, jnp.float32), np.float64)
    lo, la, ln = to64(logits_orig), to64(logits_adv), to64(logits_natural)
    a, p, ng = to64(x4s_natural), to64(x4s_adv), to64(x4s_neg)
    yl = np.asarray(y)
    n, c = lo.shape

    def log_softmax(x):
        m = x.max(axis=1, keepdims=True)
        z = x - m
        return z - np.log(np.exp(z).sum(axis=1, keepdims=True))

    lse = np.log(np.exp(lo - lo.max(1, keepdims=True)).sum(1)) + lo.max(1)
    ce = np.mean(lse - lo[np.arange(n), yl])
    mse = np.mean((lo - la) ** 2)

    d_ap = np.sqrt(((a - p + _PD_EPS) ** 2).sum(-1))
    d_an = np.sqrt(((a - ng + _PD_EPS) ** 2).sum(-1))
    trip = np.mean(np.maximum(d_ap - d_an + _MARGIN, 0.0))

    lp_a = log_softmax(la)
    lp_n = log_softmax(ln)
    p_n = np.exp(lp_n)
    kl = (p_n * (lp_n - lp_a)).sum() / n

    return ce + mse + trip + beta * kl


def _make_inputs(seed, n, c, d, f_dim, dtype):
    ks = jax.random.split(jax.random.PRNGKey(seed), 13)
    rnd = lambda k, shape: jax.random.normal(k, shape, jnp.float32).astype(dtype)
    logits_adv = rnd(ks[0], (n, c))
    logits_natural = rnd(ks[1], (n, c))
    logits_neg = rnd(ks[2], (n, c))
    logits_orig = rnd(ks[3], (n, c))
    x4s_adv = rnd(ks[4], (n, d))
    x4s_natural = rnd(ks[5], (n, d))
    x4s_neg = rnd(ks[6], (n, d))
    x4s_orig = rnd(ks[7], (n, d))
    feats = [rnd(ks[8 + i], (n, f_dim)) for i in range(4)]
    y = jax.random.randint(ks[12], (n,), 0, c)
    out_adv = (feats[0], x4s_adv, logits_adv)
    out_natural = (feats[1], x4s_natural, logits_natural)
    out_neg = (feats[2], x4s_neg, logits_neg)
    out_orig = (feats[3], x4s_orig, logits_orig)
    return out_adv, out_natural, out_neg, out_orig, y


if __name__ == "__main__":
    beta = 1.0

    # 1) Small deterministic f32 example: batch=48, num_classes=10, feat dim=32.
    out_adv, out_nat, out_neg, out_orig, y = _make_inputs(0, 48, 10, 32, 64, jnp.float32)
    loss = jax.block_until_ready(lbgat_loss(out_adv, out_nat, out_neg, out_orig, y, beta=beta))
    ref = _reference_lbgat(out_orig[2], out_adv[2], out_nat[2],
                           out_nat[1], out_adv[1], out_neg[1], y, beta=beta)
    np.testing.assert_allclose(np.asarray(loss), ref, rtol=1e-3, atol=1e-5)

    # 2) Partial-tail-block path (no wrapper pad): batch=200 with a 64-row tile.
    out_adv, out_nat, out_neg, out_orig, y = _make_inputs(1, 200, 10, 32, 64, jnp.float32)
    loss = jax.block_until_ready(lbgat_loss(out_adv, out_nat, out_neg, out_orig, y,
                                            beta=beta, tm=64))
    ref = _reference_lbgat(out_orig[2], out_adv[2], out_nat[2],
                           out_nat[1], out_adv[1], out_neg[1], y, beta=beta)
    np.testing.assert_allclose(np.asarray(loss), ref, rtol=1e-3, atol=1e-5)

    # 3) Native-bf16 streaming path (inputs stay bf16 in HBM, cast in-kernel).
    out_adv, out_nat, out_neg, out_orig, y = _make_inputs(2, 48, 10, 32, 64, jnp.bfloat16)
    loss = jax.block_until_ready(lbgat_loss(out_adv, out_nat, out_neg, out_orig, y, beta=beta))
    ref = _reference_lbgat(out_orig[2], out_adv[2], out_nat[2],
                           out_nat[1], out_adv[1], out_neg[1], y, beta=beta)
    assert np.isfinite(np.asarray(loss))
    np.testing.assert_allclose(np.asarray(loss), ref, rtol=1e-2, atol=1e-4)

    print("KERNEL_OK")
</pallas_src>

<mosaic_0001>
module attributes {stable_mosaic.version = 11 : i64} {
  func.func @_lbgat_kernel(%arg0: i32, %arg1: memref<48x1xi32, #tpu.memory_space<vmem>>, %arg2: memref<48x10xf32, #tpu.memory_space<vmem>>, %arg3: memref<48x10xf32, #tpu.memory_space<vmem>>, %arg4: memref<48x10xf32, #tpu.memory_space<vmem>>, %arg5: memref<48x32xf32, #tpu.memory_space<vmem>>, %arg6: memref<48x32xf32, #tpu.memory_space<vmem>>, %arg7: memref<48x32xf32, #tpu.memory_space<vmem>>, %arg8: memref<1x1x128xf32, #tpu.memory_space<vmem>>) attributes {dimension_semantics = [#tpu.dimension_semantics<parallel>], iteration_bounds = array<i64: 1>, scalar_prefetch = 0 : i64, scratch_operands = 0 : i64, tpu.core_type = #tpu.core_type<tc>, window_params = [{transform_indices = @transform_0, window_bounds = array<i64: 48, 1>}, {transform_indices = @transform_1, window_bounds = array<i64: 48, 10>}, {transform_indices = @transform_2, window_bounds = array<i64: 48, 10>}, {transform_indices = @transform_3, window_bounds = array<i64: 48, 10>}, {transform_indices = @transform_4, window_bounds = array<i64: 48, 32>}, {transform_indices = @transform_5, window_bounds = array<i64: 48, 32>}, {transform_indices = @transform_6, window_bounds = array<i64: 48, 32>}, {transform_indices = @transform_7, window_bounds = array<i64: 1, 1, 128>}]} {
    %0 = tpu.iota {dimensions = array<i32: 0>} : vector<48x1xi32>
    %c48_i32 = arith.constant 48 : i32
    %1 = arith.muli %arg0, %c48_i32 : i32
    %2 = vector.broadcast %1 : i32 to vector<48x1xi32>
    %3 = arith.addi %0, %2 : vector<48x1xi32>
    %c48_i32_0 = arith.constant 48 : i32
    %4 = vector.broadcast %c48_i32_0 : i32 to vector<48x1xi32>
    %5 = arith.cmpi slt, %3, %4 : vector<48x1xi32>
    %6 = arith.extui %5 : vector<48x1xi1> to vector<48x1xi32>
    %7 = arith.sitofp %6 : vector<48x1xi32> to vector<48x1xf32>
    %c0 = arith.constant 0 : index
    %c0_1 = arith.constant 0 : index
    %8 = vector.load %arg2[%c0, %c0_1] : memref<48x10xf32, #tpu.memory_space<vmem>>, vector<48x10xf32>
    %cst = arith.constant 0.000000e+00 : f32
    %9 = vector.shape_cast %5 : vector<48x1xi1> to vector<48x1xi1>
    %10 = vector.broadcast %9 : vector<48x1xi1> to vector<48x10xi1>
    %11 = vector.broadcast %cst : f32 to vector<48x10xf32>
    %12 = arith.select %10, %8, %11 : vector<48x10xi1>, vector<48x10xf32>
    %c0_2 = arith.constant 0 : index
    %c0_3 = arith.constant 0 : index
    %13 = vector.load %arg3[%c0_2, %c0_3] : memref<48x10xf32, #tpu.memory_space<vmem>>, vector<48x10xf32>
    %cst_4 = arith.constant 0.000000e+00 : f32
    %14 = vector.shape_cast %5 : vector<48x1xi1> to vector<48x1xi1>
    %15 = vector.broadcast %14 : vector<48x1xi1> to vector<48x10xi1>
    %16 = vector.broadcast %cst_4 : f32 to vector<48x10xf32>
    %17 = arith.select %15, %13, %16 : vector<48x10xi1>, vector<48x10xf32>
    %c0_5 = arith.constant 0 : index
    %c0_6 = arith.constant 0 : index
    %18 = vector.load %arg4[%c0_5, %c0_6] : memref<48x10xf32, #tpu.memory_space<vmem>>, vector<48x10xf32>
    %cst_7 = arith.constant 0.000000e+00 : f32
    %19 = vector.shape_cast %5 : vector<48x1xi1> to vector<48x1xi1>
    %20 = vector.broadcast %19 : vector<48x1xi1> to vector<48x10xi1>
    %21 = vector.broadcast %cst_7 : f32 to vector<48x10xf32>
    %22 = arith.select %20, %18, %21 : vector<48x10xi1>, vector<48x10xf32>
    %c0_8 = arith.constant 0 : index
    %c0_9 = arith.constant 0 : index
    %23 = vector.load %arg5[%c0_8, %c0_9] : memref<48x32xf32, #tpu.memory_space<vmem>>, vector<48x32xf32>
    %cst_10 = arith.constant 0.000000e+00 : f32
    %24 = vector.shape_cast %5 : vector<48x1xi1> to vector<48x1xi1>
    %25 = vector.broadcast %24 : vector<48x1xi1> to vector<48x32xi1>
    %26 = vector.broadcast %cst_10 : f32 to vector<48x32xf32>
    %27 = arith.select %25, %23, %26 : vector<48x32xi1>, vector<48x32xf32>
    %c0_11 = arith.constant 0 : index
    %c0_12 = arith.constant 0 : index
    %28 = vector.load %arg6[%c0_11, %c0_12] : memref<48x32xf32, #tpu.memory_space<vmem>>, vector<48x32xf32>
    %cst_13 = arith.constant 0.000000e+00 : f32
    %29 = vector.shape_cast %5 : vector<48x1xi1> to vector<48x1xi1>
    %30 = vector.broadcast %29 : vector<48x1xi1> to vector<48x32xi1>
    %31 = vector.broadcast %cst_13 : f32 to vector<48x32xf32>
    %32 = arith.select %30, %28, %31 : vector<48x32xi1>, vector<48x32xf32>
    %c0_14 = arith.constant 0 : index
    %c0_15 = arith.constant 0 : index
    %33 = vector.load %arg7[%c0_14, %c0_15] : memref<48x32xf32, #tpu.memory_space<vmem>>, vector<48x32xf32>
    %cst_16 = arith.constant 0.000000e+00 : f32
    %34 = vector.shape_cast %5 : vector<48x1xi1> to vector<48x1xi1>
    %35 = vector.broadcast %34 : vector<48x1xi1> to vector<48x32xi1>
    %36 = vector.broadcast %cst_16 : f32 to vector<48x32xf32>
    %37 = arith.select %35, %33, %36 : vector<48x32xi1>, vector<48x32xf32>
    %cst_17 = arith.constant dense<0xFF800000> : vector<48xf32>
    %38 = vector.multi_reduction <maximumf>, %12, %cst_17 [1] : vector<48x10xf32> to vector<48xf32>
    %39 = vector.shape_cast %38 : vector<48xf32> to vector<48x1xf32>
    %40 = vector.broadcast %39 : vector<48x1xf32> to vector<48x10xf32>
    %41 = arith.subf %12, %40 : vector<48x10xf32>
    %42 = math.exp %41 : vector<48x10xf32>
    %cst_18 = arith.constant dense<0.000000e+00> : vector<48xf32>
    %43 = vector.multi_reduction <add>, %42, %cst_18 [1] : vector<48x10xf32> to vector<48xf32>
    %44 = vector.shape_cast %43 : vector<48xf32> to vector<48x1xf32>
    %45 = math.log %44 : vector<48x1xf32>
    %46 = arith.addf %39, %45 : vector<48x1xf32>
    %47 = tpu.iota {dimensions = array<i32: 1>} : vector<48x10xi32>
    %c0_19 = arith.constant 0 : index
    %c0_20 = arith.constant 0 : index
    %48 = vector.load %arg1[%c0_19, %c0_20] : memref<48x1xi32, #tpu.memory_space<vmem>>, vector<48x1xi32>
    %49 = vector.broadcast %48 : vector<48x1xi32> to vector<48x10xi32>
    %50 = arith.cmpi eq, %47, %49 : vector<48x10xi32>
    %51 = arith.extui %50 : vector<48x10xi1> to vector<48x10xi32>
    %52 = arith.sitofp %51 : vector<48x10xi32> to vector<48x10xf32>
    %53 = arith.mulf %12, %52 : vector<48x10xf32>
    %cst_21 = arith.constant dense<0.000000e+00> : vector<48xf32>
    %54 = vector.multi_reduction <add>, %53, %cst_21 [1] : vector<48x10xf32> to vector<48xf32>
    %55 = vector.shape_cast %54 : vector<48xf32> to vector<48x1xf32>
    %56 = arith.subf %46, %55 : vector<48x1xf32>
    %57 = arith.mulf %56, %7 : vector<48x1xf32>
    %58 = vector.shape_cast %57 : vector<48x1xf32> to vector<1x48x1xf32>
    %cst_22 = arith.constant dense<0.000000e+00> : vector<1xf32>
    %59 = vector.multi_reduction <add>, %58, %cst_22 [1, 2] : vector<1x48x1xf32> to vector<1xf32>
    %60 = vector.shape_cast %59 : vector<1xf32> to vector<1x1x1xf32>
    %61 = vector.extract %60[0, 0, 0] : f32 from vector<1x1x1xf32>
    %62 = arith.subf %12, %17 : vector<48x10xf32>
    %63 = arith.mulf %62, %62 : vector<48x10xf32>
    %64 = vector.shape_cast %63 : vector<48x10xf32> to vector<1x48x10xf32>
    %cst_23 = arith.constant dense<0.000000e+00> : vector<1xf32>
    %65 = vector.multi_reduction <add>, %64, %cst_23 [1, 2] : vector<1x48x10xf32> to vector<1xf32>
    %66 = vector.shape_cast %65 : vector<1xf32> to vector<1x1x1xf32>
    %67 = vector.extract %66[0, 0, 0] : f32 from vector<1x1x1xf32>
    %cst_24 = arith.constant dense<0xFF800000> : vector<48xf32>
    %68 = vector.multi_reduction <maximumf>, %22, %cst_24 [1] : vector<48x10xf32> to vector<48xf32>
    %69 = vector.shape_cast %68 : vector<48xf32> to vector<48x1xf32>
    %70 = vector.broadcast %69 : vector<48x1xf32> to vector<48x10xf32>
    %71 = arith.subf %22, %70 : vector<48x10xf32>
    %72 = math.exp %71 : vector<48x10xf32>
    %cst_25 = arith.constant dense<0.000000e+00> : vector<48xf32>
    %73 = vector.multi_reduction <add>, %72, %cst_25 [1] : vector<48x10xf32> to vector<48xf32>
    %74 = vector.shape_cast %73 : vector<48xf32> to vector<48x1xf32>
    %75 = math.log %74 : vector<48x1xf32>
    %76 = vector.broadcast %75 : vector<48x1xf32> to vector<48x10xf32>
    %77 = arith.subf %71, %76 : vector<48x10xf32>
    %78 = vector.broadcast %74 : vector<48x1xf32> to vector<48x10xf32>
    %79 = arith.divf %72, %78 : vector<48x10xf32>
    %cst_26 = arith.constant dense<0xFF800000> : vector<48xf32>
    %80 = vector.multi_reduction <maximumf>, %17, %cst_26 [1] : vector<48x10xf32> to vector<48xf32>
    %81 = vector.shape_cast %80 : vector<48xf32> to vector<48x1xf32>
    %82 = vector.broadcast %81 : vector<48x1xf32> to vector<48x10xf32>
    %83 = arith.subf %17, %82 : vector<48x10xf32>
    %84 = math.exp %83 : vector<48x10xf32>
    %cst_27 = arith.constant dense<0.000000e+00> : vector<48xf32>
    %85 = vector.multi_reduction <add>, %84, %cst_27 [1] : vector<48x10xf32> to vector<48xf32>
    %86 = vector.shape_cast %85 : vector<48xf32> to vector<48x1xf32>
    %87 = math.log %86 : vector<48x1xf32>
    %88 = vector.broadcast %87 : vector<48x1xf32> to vector<48x10xf32>
    %89 = arith.subf %83, %88 : vector<48x10xf32>
    %90 = arith.subf %77, %89 : vector<48x10xf32>
    %91 = arith.mulf %79, %90 : vector<48x10xf32>
    %cst_28 = arith.constant dense<0.000000e+00> : vector<48xf32>
    %92 = vector.multi_reduction <add>, %91, %cst_28 [1] : vector<48x10xf32> to vector<48xf32>
    %93 = vector.shape_cast %92 : vector<48xf32> to vector<48x1xf32>
    %94 = arith.mulf %93, %7 : vector<48x1xf32>
    %95 = vector.shape_cast %94 : vector<48x1xf32> to vector<1x48x1xf32>
    %cst_29 = arith.constant dense<0.000000e+00> : vector<1xf32>
    %96 = vector.multi_reduction <add>, %95, %cst_29 [1, 2] : vector<1x48x1xf32> to vector<1xf32>
    %97 = vector.shape_cast %96 : vector<1xf32> to vector<1x1x1xf32>
    %98 = vector.extract %97[0, 0, 0] : f32 from vector<1x1x1xf32>
    %99 = arith.subf %27, %32 : vector<48x32xf32>
    %cst_30 = arith.constant 9.99999997E-7 : f32
    %100 = vector.broadcast %cst_30 : f32 to vector<48x32xf32>
    %101 = arith.addf %99, %100 : vector<48x32xf32>
    %102 = arith.subf %27, %37 : vector<48x32xf32>
    %cst_31 = arith.constant 9.99999997E-7 : f32
    %103 = vector.broadcast %cst_31 : f32 to vector<48x32xf32>
    %104 = arith.addf %102, %103 : vector<48x32xf32>
    %105 = arith.mulf %101, %101 : vector<48x32xf32>
    %cst_32 = arith.constant dense<0.000000e+00> : vector<48xf32>
    %106 = vector.multi_reduction <add>, %105, %cst_32 [1] : vector<48x32xf32> to vector<48xf32>
    %107 = vector.shape_cast %106 : vector<48xf32> to vector<48x1xf32>
    %108 = math.sqrt %107 : vector<48x1xf32>
    %109 = arith.mulf %104, %104 : vector<48x32xf32>
    %cst_33 = arith.constant dense<0.000000e+00> : vector<48xf32>
    %110 = vector.multi_reduction <add>, %109, %cst_33 [1] : vector<48x32xf32> to vector<48xf32>
    %111 = vector.shape_cast %110 : vector<48xf32> to vector<48x1xf32>
    %112 = math.sqrt %111 : vector<48x1xf32>
    %113 = arith.subf %108, %112 : vector<48x1xf32>
    %cst_34 = arith.constant 1.000000e+00 : f32
    %114 = vector.broadcast %cst_34 : f32 to vector<48x1xf32>
    %115 = arith.addf %113, %114 : vector<48x1xf32>
    %cst_35 = arith.constant 0.000000e+00 : f32
    %116 = vector.broadcast %cst_35 : f32 to vector<48x1xf32>
    %117 = arith.maximumf %115, %116 : vector<48x1xf32>
    %118 = arith.mulf %117, %7 : vector<48x1xf32>
    %119 = vector.shape_cast %118 : vector<48x1xf32> to vector<1x48x1xf32>
    %cst_36 = arith.constant dense<0.000000e+00> : vector<1xf32>
    %120 = vector.multi_reduction <add>, %119, %cst_36 [1, 2] : vector<1x48x1xf32> to vector<1xf32>
    %121 = vector.shape_cast %120 : vector<1xf32> to vector<1x1x1xf32>
    %122 = vector.extract %121[0, 0, 0] : f32 from vector<1x1x1xf32>
    %123 = tpu.iota {dimensions = array<i32: 2>} : vector<1x1x128xi32>
    %c0_i32 = arith.constant 0 : i32
    %124 = vector.broadcast %c0_i32 : i32 to vector<1x1x128xi32>
    %125 = arith.cmpi eq, %123, %124 : vector<1x1x128xi32>
    %126 = arith.extui %125 : vector<1x1x128xi1> to vector<1x1x128xi32>
    %127 = arith.sitofp %126 : vector<1x1x128xi32> to vector<1x1x128xf32>
    %128 = vector.broadcast %61 : f32 to vector<1x1x128xf32>
    %129 = arith.mulf %128, %127 : vector<1x1x128xf32>
    %c1_i32 = arith.constant 1 : i32
    %130 = vector.broadcast %c1_i32 : i32 to vector<1x1x128xi32>
    %131 = arith.cmpi eq, %123, %130 : vector<1x1x128xi32>
    %132 = arith.extui %131 : vector<1x1x128xi1> to vector<1x1x128xi32>
    %133 = arith.sitofp %132 : vector<1x1x128xi32> to vector<1x1x128xf32>
    %134 = vector.broadcast %67 : f32 to vector<1x1x128xf32>
    %135 = arith.mulf %134, %133 : vector<1x1x128xf32>
    %136 = arith.addf %129, %135 : vector<1x1x128xf32>
    %c2_i32 = arith.constant 2 : i32
    %137 = vector.broadcast %c2_i32 : i32 to vector<1x1x128xi32>
    %138 = arith.cmpi eq, %123, %137 : vector<1x1x128xi32>
    %139 = arith.extui %138 : vector<1x1x128xi1> to vector<1x1x128xi32>
    %140 = arith.sitofp %139 : vector<1x1x128xi32> to vector<1x1x128xf32>
    %141 = vector.broadcast %98 : f32 to vector<1x1x128xf32>
    %142 = arith.mulf %141, %140 : vector<1x1x128xf32>
    %143 = arith.addf %136, %142 : vector<1x1x128xf32>
    %c3_i32 = arith.constant 3 : i32
    %144 = vector.broadcast %c3_i32 : i32 to vector<1x1x128xi32>
    %145 = arith.cmpi eq, %123, %144 : vector<1x1x128xi32>
    %146 = arith.extui %145 : vector<1x1x128xi1> to vector<1x1x128xi32>
    %147 = arith.sitofp %146 : vector<1x1x128xi32> to vector<1x1x128xf32>
    %148 = vector.broadcast %122 : f32 to vector<1x1x128xf32>
    %149 = arith.mulf %148, %147 : vector<1x1x128xf32>
    %150 = arith.addf %143, %149 : vector<1x1x128xf32>
    %c0_37 = arith.constant 0 : index
    %c0_38 = arith.constant 0 : index
    %c0_39 = arith.constant 0 : index
    %151 = vector.load %arg8[%c0_37, %c0_38, %c0_39] : memref<1x1x128xf32, #tpu.memory_space<vmem>>, vector<1x1x128xf32>
    tpu.vector_store %arg8[%c0_37, %c0_38, %c0_39], %150 {strides = array<i32>} : memref<1x1x128xf32, #tpu.memory_space<vmem>>, vector<1x1x128xf32>,
    return
  }
  func.func @transform_0(%arg0: i32) -> (i32, i32) {
    %c0_i32 = arith.constant 0 : i32
    %c0_i32_0 = arith.constant 0 : i32
    return %arg0, %c0_i32 : i32, i32
  }
  func.func @transform_1(%arg0: i32) -> (i32, i32) {
    %c0_i32 = arith.constant 0 : i32
    %c0_i32_0 = arith.constant 0 : i32
    return %arg0, %c0_i32 : i32, i32
  }
  func.func @transform_2(%arg0: i32) -> (i32, i32) {
    %c0_i32 = arith.constant 0 : i32
    %c0_i32_0 = arith.constant 0 : i32
    return %arg0, %c0_i32 : i32, i32
  }
  func.func @transform_3(%arg0: i32) -> (i32, i32) {
    %c0_i32 = arith.constant 0 : i32
    %c0_i32_0 = arith.constant 0 : i32
    return %arg0, %c0_i32 : i32, i32
  }
  func.func @transform_4(%arg0: i32) -> (i32, i32) {
    %c0_i32 = arith.constant 0 : i32
    %c0_i32_0 = arith.constant 0 : i32
    return %arg0, %c0_i32 : i32, i32
  }
  func.func @transform_5(%arg0: i32) -> (i32, i32) {
    %c0_i32 = arith.constant 0 : i32
    %c0_i32_0 = arith.constant 0 : i32
    return %arg0, %c0_i32 : i32, i32
  }
  func.func @transform_6(%arg0: i32) -> (i32, i32) {
    %c0_i32 = arith.constant 0 : i32
    %c0_i32_0 = arith.constant 0 : i32
    return %arg0, %c0_i32 : i32, i32
  }
  func.func @transform_7(%arg0: i32) -> (i32, i32, i32) {
    %c0_i32 = arith.constant 0 : i32
    %c0_i32_0 = arith.constant 0 : i32
    %c0_i32_1 = arith.constant 0 : i32
    return %arg0, %c0_i32, %c0_i32_0 : i32, i32, i32
  }
}

</mosaic_0001>

<llo_original>
// kernel: tpu_custom_call.1
$region0: #{tpu_custom_call.1}
  #allocation0 [shape = 'u32[]', space=smem, size = 0x4, offset = 0x4, fixed_abs, tag = 'smem constant byte address 0x4 - core index']
  #allocation1 [shape = 'u32[144,128]{1,0:T(1,128)}', space=vmem, size = 0x12000, scoped, tag = 'internal scratch']
  %s0 = inlined_call_operand.vmem [shape: s32[48,1], index: 0, kind: input, shape index: {}]
  %s1 = inlined_call_operand.vmem [shape: f32[48,10], index: 1, kind: input, shape index: {}]
  %s2 = inlined_call_operand.vmem [shape: f32[48,10], index: 2, kind: input, shape index: {}]
  %s3 = inlined_call_operand.vmem [shape: f32[48,10], index: 3, kind: input, shape index: {}]
  %s4 = inlined_call_operand.vmem [shape: f32[48,32], index: 4, kind: input, shape index: {}]
  %s5 = inlined_call_operand.vmem [shape: f32[48,32], index: 5, kind: input, shape index: {}]
  %s6 = inlined_call_operand.vmem [shape: f32[48,32], index: 6, kind: input, shape index: {}]
  %s7 = inlined_call_operand.hbm [shape: f32[1,1,128], index: 7, kind: output, shape index: {}]
  %s8 = sld [smem:[#allocation0]]
  $region38: #{tpu_custom_call.1} parent=0
    _
  %s10 = ssub.s32 1, %s8
  %s11 = scalar_select 0, %s10, %s8
  $region1: #{tpu_custom_call.1} parent=0
    #allocation2 [shape = 'u8[512]{0}', space=vmem, size = 0x400, scoped, tag = 'output window, operand 0, single buffered']
    #allocation3 [shape = 's32[1]{0}', space=sflag, size = 0x4, scoped, tag = 'scoped memory for tpu_custom_call.1']
    %12 = vsyncpa [#allocation3], 0
    // Predicated region
    $region2: #{tpu_custom_call.1} parent=1 // pred_check
      _
    $region3: #{tpu_custom_call.1} parent=1 // pred_check_branch
      %14 = sbr.rel (0) target = $region5
    $region4: #{tpu_custom_call.1} parent=1 // pred_region
      _
    $region5: #{tpu_custom_call.1} parent=1 // pred_fallthru
      _
    // Predicated region
    $region6: #{tpu_custom_call.1} parent=1 // pred_check
      _
    $region7: #{tpu_custom_call.1} parent=1 // pred_check_branch
      %16 = sbr.rel (0) target = $region9
    $region8: #{tpu_custom_call.1} parent=1 // pred_region
      _
    $region9: #{tpu_custom_call.1} parent=1 // pred_fallthru
      _
    // Predicated region
    $region10: #{tpu_custom_call.1} parent=1 // pred_check
      _
    $region11: #{tpu_custom_call.1} parent=1 // pred_check_branch
      %18 = sbr.rel (0) target = $region13
    $region12: #{tpu_custom_call.1} parent=1 // pred_region
      _
    $region13: #{tpu_custom_call.1} parent=1 // pred_fallthru
      _
    // Predicated region
    $region14: #{tpu_custom_call.1} parent=1 // pred_check
      _
    $region15: #{tpu_custom_call.1} parent=1 // pred_check_branch
      %20 = sbr.rel (0) target = $region17
    $region16: #{tpu_custom_call.1} parent=1 // pred_region
      _
    $region17: #{tpu_custom_call.1} parent=1 // pred_fallthru
      _
    // Predicated region
    $region18: #{tpu_custom_call.1} parent=1 // pred_check
      _
    $region19: #{tpu_custom_call.1} parent=1 // pred_check_branch
      %22 = sbr.rel (0) target = $region21
    $region20: #{tpu_custom_call.1} parent=1 // pred_region
      _
    $region21: #{tpu_custom_call.1} parent=1 // pred_fallthru
      _
    // Predicated region
    $region22: #{tpu_custom_call.1} parent=1 // pred_check
      _
    $region23: #{tpu_custom_call.1} parent=1 // pred_check_branch
      %24 = sbr.rel (0) target = $region25
    $region24: #{tpu_custom_call.1} parent=1 // pred_region
      _
    $region25: #{tpu_custom_call.1} parent=1 // pred_fallthru
      _
    // Predicated region
    $region26: #{tpu_custom_call.1} parent=1 // pred_check
      _
    $region27: #{tpu_custom_call.1} parent=1 // pred_check_branch
      %26 = sbr.rel (0) target = $region29
    $region28: #{tpu_custom_call.1} parent=1 // pred_region
      _
    $region29: #{tpu_custom_call.1} parent=1 // pred_fallthru
      _
    %v27 = vlaneseq
    %v28 = vshrl.u32 %v27, 7
    %v29 = vadd.s32 %v28, 8
    %v30 = vadd.s32 %v28, 16
    %v31 = vadd.s32 %v28, 24
    %v32 = vadd.s32 %v28, 32
    %v33 = vadd.s32 %v28, 40
    %s34 = smul.u32 0, 48
    %v35 = vstv %s34
    %v36 = vadd.s32 %v28, %v35
    %v37 = vadd.s32 %v29, %v35
    %v38 = vadd.s32 %v30, %v35
    %v39 = vadd.s32 %v31, %v35
    %v40 = vadd.s32 %v32, %v35
    %v41 = vadd.s32 %v33, %v35
    %vm42 = vcmp.lt.s32.totalorder %v36, 48
    %vm43 = vcmp.lt.s32.totalorder %v37, 48
    %vm44 = vcmp.lt.s32.totalorder %v38, 48
    %vm45 = vcmp.lt.s32.totalorder %v39, 48
    %vm46 = vcmp.lt.s32.totalorder %v40, 48
    %vm47 = vcmp.lt.s32.totalorder %v41, 48
    %v48 = vsel %vm42, 1, 0
    %v49 = vsel %vm43, 1, 0
    %v50 = vsel %vm44, 1, 0
    %v51 = vsel %vm45, 1, 0
    %v52 = vsel %vm46, 1, 0
    %v53 = vsel %vm47, 1, 0
    %v54 = vcvt.s32.f32 %v48
    %v55 = vcvt.s32.f32 %v49
    %v56 = vcvt.s32.f32 %v50
    %v57 = vcvt.s32.f32 %v51
    %v58 = vcvt.s32.f32 %v52
    %v59 = vcvt.s32.f32 %v53
    %v60 = vld [vmem:[%s1] sm:$0xff]
    %v61 = vld [vmem:[%s1 + $0x8] sm:$0xff]
    %v62 = vld [vmem:[%s1 + $0x10] sm:$0xff]
    %v63 = vld [vmem:[%s1 + $0x18] sm:$0xff]
    %v64 = vld [vmem:[%s1 + $0x20] sm:$0xff]
    %v65 = vld [vmem:[%s1 + $0x28] sm:$0xff]
    %vm66 = vcmp.eq.s32.totalorder %v48, 1
    %vm67 = vcmp.eq.s32.totalorder %v49, 1
    %vm68 = vcmp.eq.s32.totalorder %v50, 1
    %vm69 = vcmp.eq.s32.totalorder %v51, 1
    %vm70 = vcmp.eq.s32.totalorder %v52, 1
    %vm71 = vcmp.eq.s32.totalorder %v53, 1
    %v72 = vsel %vm66, %v60, 0.0
    %v73 = vsel %vm67, %v61, 0.0
    %v74 = vsel %vm68, %v62, 0.0
    %v75 = vsel %vm69, %v63, 0.0
    %v76 = vsel %vm70, %v64, 0.0
    %v77 = vsel %vm71, %v65, 0.0
    %v78 = vld [vmem:[%s2] sm:$0xff]
    %v79 = vld [vmem:[%s2 + $0x8] sm:$0xff]
    %v80 = vld [vmem:[%s2 + $0x10] sm:$0xff]
    %v81 = vld [vmem:[%s2 + $0x18] sm:$0xff]
    %v82 = vld [vmem:[%s2 + $0x20] sm:$0xff]
    %v83 = vld [vmem:[%s2 + $0x28] sm:$0xff]
    %v84 = vsel %vm66, %v78, 0.0
    %v85 = vsel %vm67, %v79, 0.0
    %v86 = vsel %vm68, %v80, 0.0
    %v87 = vsel %vm69, %v81, 0.0
    %v88 = vsel %vm70, %v82, 0.0
    %v89 = vsel %vm71, %v83, 0.0
    %v90 = vld [vmem:[%s3] sm:$0xff]
    %v91 = vld [vmem:[%s3 + $0x8] sm:$0xff]
    %v92 = vld [vmem:[%s3 + $0x10] sm:$0xff]
    %v93 = vld [vmem:[%s3 + $0x18] sm:$0xff]
    %v94 = vld [vmem:[%s3 + $0x20] sm:$0xff]
    %v95 = vld [vmem:[%s3 + $0x28] sm:$0xff]
    %v96 = vsel %vm66, %v90, 0.0
    %v97 = vsel %vm67, %v91, 0.0
    %v98 = vsel %vm68, %v92, 0.0
    %v99 = vsel %vm69, %v93, 0.0
    %v100 = vsel %vm70, %v94, 0.0
    %v101 = vsel %vm71, %v95, 0.0
    %v102 = vld [vmem:[%s4] sm:$0xff]
    %v103 = vld [vmem:[%s4 + $0x8] sm:$0xff]
    %v104 = vld [vmem:[%s4 + $0x10] sm:$0xff]
    %v105 = vld [vmem:[%s4 + $0x18] sm:$0xff]
    %v106 = vld [vmem:[%s4 + $0x20] sm:$0xff]
    %v107 = vld [vmem:[%s4 + $0x28] sm:$0xff]
    %v108 = vsel %vm66, %v102, 0.0
    %v109 = vsel %vm67, %v103, 0.0
    %v110 = vsel %vm68, %v104, 0.0
    %v111 = vsel %vm69, %v105, 0.0
    %v112 = vsel %vm70, %v106, 0.0
    %v113 = vsel %vm71, %v107, 0.0
    %v114 = vld [vmem:[%s5] sm:$0xff]
    %v115 = vld [vmem:[%s5 + $0x8] sm:$0xff]
    %v116 = vld [vmem:[%s5 + $0x10] sm:$0xff]
    %v117 = vld [vmem:[%s5 + $0x18] sm:$0xff]
    %v118 = vld [vmem:[%s5 + $0x20] sm:$0xff]
    %v119 = vld [vmem:[%s5 + $0x28] sm:$0xff]
    %v120 = vsel %vm66, %v114, 0.0
    %v121 = vsel %vm67, %v115, 0.0
    %v122 = vsel %vm68, %v116, 0.0
    %v123 = vsel %vm69, %v117, 0.0
    %v124 = vsel %vm70, %v118, 0.0
    %v125 = vsel %vm71, %v119, 0.0
    %v126 = vld [vmem:[%s6] sm:$0xff]
    %v127 = vld [vmem:[%s6 + $0x8] sm:$0xff]
    %v128 = vld [vmem:[%s6 + $0x10] sm:$0xff]
    %v129 = vld [vmem:[%s6 + $0x18] sm:$0xff]
    %v130 = vld [vmem:[%s6 + $0x20] sm:$0xff]
    %v131 = vld [vmem:[%s6 + $0x28] sm:$0xff]
    %v132 = vsel %vm66, %v126, 0.0
    %v133 = vsel %vm67, %v127, 0.0
    %v134 = vsel %vm68, %v128, 0.0
    %v135 = vsel %vm69, %v129, 0.0
    %v136 = vsel %vm70, %v130, 0.0
    %v137 = vsel %vm71, %v131, 0.0
    %vm138 = vcmask 80896
    %v139 = vsel %vm138, %v72, -inf
    %140 = vmax.xlane.f32.xlu0 %v139
    %v141 = vpop.xlane.xlu0 %140
    %v142 = vsel %vm138, %v73, -inf
    %143 = vmax.xlane.f32.xlu0 %v142
    %v144 = vpop.xlane.xlu0 %143
    %v145 = vsel %vm138, %v74, -inf
    %146 = vmax.xlane.f32.xlu0 %v145
    %v147 = vpop.xlane.xlu0 %146
    %v148 = vsel %vm138, %v75, -inf
    %149 = vmax.xlane.f32.xlu0 %v148
    %v150 = vpop.xlane.xlu0 %149
    %v151 = vsel %vm138, %v76, -inf
    %152 = vmax.xlane.f32.xlu0 %v151
    %v153 = vpop.xlane.xlu0 %152
    %v154 = vsel %vm138, %v77, -inf
    %155 = vmax.xlane.f32.xlu0 %v154
    %v156 = vpop.xlane.xlu0 %155
    %v157 = vsub.f32 %v72, %v141
    %v158 = vsub.f32 %v73, %v144
    %v159 = vsub.f32 %v74, %v147
    %v160 = vsub.f32 %v75, %v150
    %v161 = vsub.f32 %v76, %v153
    %v162 = vsub.f32 %v77, %v156
    %v163 = vmul.f32 %v157, 1.442695
    %v164 = vpow.pop %v163
    %v165 = vmul.f32 %v158, 1.442695
    %v166 = vpow.pop %v165
    %v167 = vmul.f32 %v159, 1.442695
    %v168 = vpow.pop %v167
    %v169 = vmul.f32 %v160, 1.442695
    %v170 = vpow.pop %v169
    %v171 = vmul.f32 %v161, 1.442695
    %v172 = vpow.pop %v171
    %v173 = vmul.f32 %v162, 1.442695
    %v174 = vpow.pop %v173
    %v175 = vsel %vm138, %v164, 0.0
    %176 = vadd.xlane.f32.xlu0 %v175
    %v177 = vpop.xlane.xlu0 %176
    %v178 = vsel %vm138, %v166, 0.0
    %179 = vadd.xlane.f32.xlu0 %v178
    %v180 = vpop.xlane.xlu0 %179
    %v181 = vsel %vm138, %v168, 0.0
    %182 = vadd.xlane.f32.xlu0 %v181
    %v183 = vpop.xlane.xlu0 %182
    %v184 = vsel %vm138, %v170, 0.0
    %185 = vadd.xlane.f32.xlu0 %v184
    %v186 = vpop.xlane.xlu0 %185
    %v187 = vsel %vm138, %v172, 0.0
    %188 = vadd.xlane.f32.xlu0 %v187
    %v189 = vpop.xlane.xlu0 %188
    %v190 = vsel %vm138, %v174, 0.0
    %191 = vadd.xlane.f32.xlu0 %v190
    %v192 = vpop.xlane.xlu0 %191
    %v193 = vlog2.pop %v177
    %v194 = vmul.f32 %v193, 0.6931472
    %v195 = vlog2.pop %v180
    %v196 = vmul.f32 %v195, 0.6931472
    %v197 = vlog2.pop %v183
    %v198 = vmul.f32 %v197, 0.6931472
    %v199 = vlog2.pop %v186
    %v200 = vmul.f32 %v199, 0.6931472
    %v201 = vlog2.pop %v189
    %v202 = vmul.f32 %v201, 0.6931472
    %v203 = vlog2.pop %v192
    %v204 = vmul.f32 %v203, 0.6931472
    %v205 = vadd.f32 %v141, %v194
    %v206 = vadd.f32 %v144, %v196
    %v207 = vadd.f32 %v147, %v198
    %v208 = vadd.f32 %v150, %v200
    %v209 = vadd.f32 %v153, %v202
    %v210 = vadd.f32 %v156, %v204
    %v211 = vlaneseq
    %v212 = vand.u32 %v211, 127
    %v213 = vld [vmem:[%s0] sm:$0xff]
    %v214 = vld [vmem:[%s0 + $0x8] sm:$0xff]
    %v215 = vld [vmem:[%s0 + $0x10] sm:$0xff]
    %v216 = vld [vmem:[%s0 + $0x18] sm:$0xff]
    %v217 = vld [vmem:[%s0 + $0x20] sm:$0xff]
    %v218 = vld [vmem:[%s0 + $0x28] sm:$0xff]
    %219 = vset.pattern.permute.xlu0 0
    %220 = vperm.xlu0 %219, %v213
    %v221 = vpop.permute.xlu0 %220
    %222 = vset.pattern.permute.xlu0 0
    %223 = vperm.xlu0 %222, %v214
    %v224 = vpop.permute.xlu0 %223
    %225 = vset.pattern.permute.xlu0 0
    %226 = vperm.xlu0 %225, %v215
    %v227 = vpop.permute.xlu0 %226
    %228 = vset.pattern.permute.xlu0 0
    %229 = vperm.xlu0 %228, %v216
    %v230 = vpop.permute.xlu0 %229
    %231 = vset.pattern.permute.xlu0 0
    %232 = vperm.xlu0 %231, %v217
    %v233 = vpop.permute.xlu0 %232
    %234 = vset.pattern.permute.xlu0 0
    %235 = vperm.xlu0 %234, %v218
    %v236 = vpop.permute.xlu0 %235
    %vm237 = vcmp.eq.s32.totalorder %v212, %v221
    %vm238 = vcmp.eq.s32.totalorder %v212, %v224
    %vm239 = vcmp.eq.s32.totalorder %v212, %v227
    %vm240 = vcmp.eq.s32.totalorder %v212, %v230
    %vm241 = vcmp.eq.s32.totalorder %v212, %v233
    %vm242 = vcmp.eq.s32.totalorder %v212, %v236
    %v243 = vsel %vm237, 1, 0
    %v244 = vsel %vm238, 1, 0
    %v245 = vsel %vm239, 1, 0
    %v246 = vsel %vm240, 1, 0
    %v247 = vsel %vm241, 1, 0
    %v248 = vsel %vm242, 1, 0
    %v249 = vcvt.s32.f32 %v243
    %v250 = vcvt.s32.f32 %v244
    %v251 = vcvt.s32.f32 %v245
    %v252 = vcvt.s32.f32 %v246
    %v253 = vcvt.s32.f32 %v247
    %v254 = vcvt.s32.f32 %v248
    %v255 = vmul.f32 %v72, %v249
    %v256 = vmul.f32 %v73, %v250
    %v257 = vmul.f32 %v74, %v251
    %v258 = vmul.f32 %v75, %v252
    %v259 = vmul.f32 %v76, %v253
    %v260 = vmul.f32 %v77, %v254
    %v261 = vsel %vm138, %v255, 0.0
    %262 = vadd.xlane.f32.xlu0 %v261
    %v263 = vpop.xlane.xlu0 %262
    %v264 = vsel %vm138, %v256, 0.0
    %265 = vadd.xlane.f32.xlu0 %v264
    %v266 = vpop.xlane.xlu0 %265
    %v267 = vsel %vm138, %v257, 0.0
    %268 = vadd.xlane.f32.xlu0 %v267
    %v269 = vpop.xlane.xlu0 %268
    %v270 = vsel %vm138, %v258, 0.0
    %271 = vadd.xlane.f32.xlu0 %v270
    %v272 = vpop.xlane.xlu0 %271
    %v273 = vsel %vm138, %v259, 0.0
    %274 = vadd.xlane.f32.xlu0 %v273
    %v275 = vpop.xlane.xlu0 %274
    %v276 = vsel %vm138, %v260, 0.0
    %277 = vadd.xlane.f32.xlu0 %v276
    %v278 = vpop.xlane.xlu0 %277
    %v279 = vsub.f32 %v205, %v263
    %v280 = vsub.f32 %v206, %v266
    %v281 = vsub.f32 %v207, %v269
    %v282 = vsub.f32 %v208, %v272
    %v283 = vsub.f32 %v209, %v275
    %v284 = vsub.f32 %v210, %v278
    %v285 = vmul.f32 %v279, %v54
    %v286 = vmul.f32 %v280, %v55
    %v287 = vmul.f32 %v281, %v56
    %v288 = vmul.f32 %v282, %v57
    %v289 = vmul.f32 %v283, %v58
    %v290 = vmul.f32 %v284, %v59
    %vm291 = vcmask 7168
    %v292 = vsel %vm291, %v285, 0.0
    %v293 = vsel %vm291, %v286, 0.0
    %v294 = vadd.f32 %v292, %v293
    %v295 = vsel %vm291, %v287, 0.0
    %v296 = vadd.f32 %v294, %v295
    %v297 = vsel %vm291, %v288, 0.0
    %v298 = vadd.f32 %v296, %v297
    %v299 = vsel %vm291, %v289, 0.0
    %v300 = vadd.f32 %v298, %v299
    %v301 = vsel %vm291, %v290, 0.0
    %v302 = vadd.f32 %v300, %v301
    %303 = vadd.xlane.f32.xlu0 %v302
    %v304 = vpop.xlane.xlu0 %303
    %v305 = vrot.slane %v304, 4
    %v306 = vadd.f32 %v304, %v305
    %v307 = vrot.slane %v306, 2
    %v308 = vadd.f32 %v306, %v307
    %v309 = vrot.slane %v308, 1
    %v310 = vadd.f32 %v308, %v309
    %s311 = vtos %v310
    %v312 = vsub.f32 %v72, %v84
    %v313 = vsub.f32 %v73, %v85
    %v314 = vsub.f32 %v74, %v86
    %v315 = vsub.f32 %v75, %v87
    %v316 = vsub.f32 %v76, %v88
    %v317 = vsub.f32 %v77, %v89
    %v318 = vmul.f32 %v312, %v312
    %v319 = vmul.f32 %v313, %v313
    %v320 = vmul.f32 %v314, %v314
    %v321 = vmul.f32 %v315, %v315
    %v322 = vmul.f32 %v316, %v316
    %v323 = vmul.f32 %v317, %v317
    %v324 = vsel %vm138, %v318, 0.0
    %v325 = vsel %vm138, %v319, 0.0
    %v326 = vadd.f32 %v324, %v325
    %v327 = vsel %vm138, %v320, 0.0
    %v328 = vadd.f32 %v326, %v327
    %v329 = vsel %vm138, %v321, 0.0
    %v330 = vadd.f32 %v328, %v329
    %v331 = vsel %vm138, %v322, 0.0
    %v332 = vadd.f32 %v330, %v331
    %v333 = vsel %vm138, %v323, 0.0
    %v334 = vadd.f32 %v332, %v333
    %335 = vadd.xlane.f32.xlu0 %v334
    %v336 = vpop.xlane.xlu0 %335
    %v337 = vrot.slane %v336, 4
    %v338 = vadd.f32 %v336, %v337
    %v339 = vrot.slane %v338, 2
    %v340 = vadd.f32 %v338, %v339
    %v341 = vrot.slane %v340, 1
    %v342 = vadd.f32 %v340, %v341
    %s343 = vtos %v342
    %v344 = vsel %vm138, %v96, -inf
    %345 = vmax.xlane.f32.xlu0 %v344
    %v346 = vpop.xlane.xlu0 %345
    %v347 = vsel %vm138, %v97, -inf
    %348 = vmax.xlane.f32.xlu0 %v347
    %v349 = vpop.xlane.xlu0 %348
    %v350 = vsel %vm138, %v98, -inf
    %351 = vmax.xlane.f32.xlu0 %v350
    %v352 = vpop.xlane.xlu0 %351
    %v353 = vsel %vm138, %v99, -inf
    %354 = vmax.xlane.f32.xlu0 %v353
    %v355 = vpop.xlane.xlu0 %354
    %v356 = vsel %vm138, %v100, -inf
    %357 = vmax.xlane.f32.xlu0 %v356
    %v358 = vpop.xlane.xlu0 %357
    %v359 = vsel %vm138, %v101, -inf
    %360 = vmax.xlane.f32.xlu0 %v359
    %v361 = vpop.xlane.xlu0 %360
    %v362 = vsub.f32 %v96, %v346
    %v363 = vsub.f32 %v97, %v349
    %v364 = vsub.f32 %v98, %v352
    %v365 = vsub.f32 %v99, %v355
    %v366 = vsub.f32 %v100, %v358
    %v367 = vsub.f32 %v101, %v361
    %v368 = vmul.f32 %v362, 1.442695
    %v369 = vpow.pop %v368
    %v370 = vmul.f32 %v363, 1.442695
    %v371 = vpow.pop %v370
    %v372 = vmul.f32 %v364, 1.442695
    %v373 = vpow.pop %v372
    %v374 = vmul.f32 %v365, 1.442695
    %v375 = vpow.pop %v374
    %v376 = vmul.f32 %v366, 1.442695
    %v377 = vpow.pop %v376
    %v378 = vmul.f32 %v367, 1.442695
    %v379 = vpow.pop %v378
    %v380 = vsel %vm138, %v369, 0.0
    %381 = vadd.xlane.f32.xlu0 %v380
    %v382 = vpop.xlane.xlu0 %381
    %v383 = vsel %vm138, %v371, 0.0
    %384 = vadd.xlane.f32.xlu0 %v383
    %v385 = vpop.xlane.xlu0 %384
    %v386 = vsel %vm138, %v373, 0.0
    %387 = vadd.xlane.f32.xlu0 %v386
    %v388 = vpop.xlane.xlu0 %387
    %v389 = vsel %vm138, %v375, 0.0
    %390 = vadd.xlane.f32.xlu0 %v389
    %v391 = vpop.xlane.xlu0 %390
    %v392 = vsel %vm138, %v377, 0.0
    %393 = vadd.xlane.f32.xlu0 %v392
    %v394 = vpop.xlane.xlu0 %393
    %v395 = vsel %vm138, %v379, 0.0
    %396 = vadd.xlane.f32.xlu0 %v395
    %v397 = vpop.xlane.xlu0 %396
    %v398 = vlog2.pop %v382
    %v399 = vmul.f32 %v398, 0.6931472
    %v400 = vlog2.pop %v385
    %v401 = vmul.f32 %v400, 0.6931472
    %v402 = vlog2.pop %v388
    %v403 = vmul.f32 %v402, 0.6931472
    %v404 = vlog2.pop %v391
    %v405 = vmul.f32 %v404, 0.6931472
    %v406 = vlog2.pop %v394
    %v407 = vmul.f32 %v406, 0.6931472
    %v408 = vlog2.pop %v397
    %v409 = vmul.f32 %v408, 0.6931472
    %v410 = vsub.f32 %v362, %v399
    %v411 = vsub.f32 %v363, %v401
    %v412 = vsub.f32 %v364, %v403
    %v413 = vsub.f32 %v365, %v405
    %v414 = vsub.f32 %v366, %v407
    %v415 = vsub.f32 %v367, %v409
    %v416 = vrcp.pop %v382
    %v417 = vmul.f32 %v369, %v416
    %v418 = vrcp.pop %v385
    %v419 = vmul.f32 %v371, %v418
    %v420 = vrcp.pop %v388
    %v421 = vmul.f32 %v373, %v420
    %v422 = vrcp.pop %v391
    %v423 = vmul.f32 %v375, %v422
    %v424 = vrcp.pop %v394
    %v425 = vmul.f32 %v377, %v424
    %v426 = vrcp.pop %v397
    %v427 = vmul.f32 %v379, %v426
    %v428 = vsel %vm138, %v84, -inf
    %429 = vmax.xlane.f32.xlu0 %v428
    %v430 = vpop.xlane.xlu0 %429
    %v431 = vsel %vm138, %v85, -inf
    %432 = vmax.xlane.f32.xlu0 %v431
    %v433 = vpop.xlane.xlu0 %432
    %v434 = vsel %vm138, %v86, -inf
    %435 = vmax.xlane.f32.xlu0 %v434
    %v436 = vpop.xlane.xlu0 %435
    %v437 = vsel %vm138, %v87, -inf
    %438 = vmax.xlane.f32.xlu0 %v437
    %v439 = vpop.xlane.xlu0 %438
    %v440 = vsel %vm138, %v88, -inf
    %441 = vmax.xlane.f32.xlu0 %v440
    %v442 = vpop.xlane.xlu0 %441
    %v443 = vsel %vm138, %v89, -inf
    %444 = vmax.xlane.f32.xlu0 %v443
    %v445 = vpop.xlane.xlu0 %444
    %v446 = vsub.f32 %v84, %v430
    %v447 = vsub.f32 %v85, %v433
    %v448 = vsub.f32 %v86, %v436
    %v449 = vsub.f32 %v87, %v439
    %v450 = vsub.f32 %v88, %v442
    %v451 = vsub.f32 %v89, %v445
    %v452 = vmul.f32 %v446, 1.442695
    %v453 = vpow.pop %v452
    %v454 = vmul.f32 %v447, 1.442695
    %v455 = vpow.pop %v454
    %v456 = vmul.f32 %v448, 1.442695
    %v457 = vpow.pop %v456
    %v458 = vmul.f32 %v449, 1.442695
    %v459 = vpow.pop %v458
    %v460 = vmul.f32 %v450, 1.442695
    %v461 = vpow.pop %v460
    %v462 = vmul.f32 %v451, 1.442695
    %v463 = vpow.pop %v462
    %v464 = vsel %vm138, %v453, 0.0
    %465 = vadd.xlane.f32.xlu0 %v464
    %v466 = vpop.xlane.xlu0 %465
    %v467 = vsel %vm138, %v455, 0.0
    %468 = vadd.xlane.f32.xlu0 %v467
    %v469 = vpop.xlane.xlu0 %468
    %v470 = vsel %vm138, %v457, 0.0
    %471 = vadd.xlane.f32.xlu0 %v470
    %v472 = vpop.xlane.xlu0 %471
    %v473 = vsel %vm138, %v459, 0.0
    %474 = vadd.xlane.f32.xlu0 %v473
    %v475 = vpop.xlane.xlu0 %474
    %v476 = vsel %vm138, %v461, 0.0
    %477 = vadd.xlane.f32.xlu0 %v476
    %v478 = vpop.xlane.xlu0 %477
    %v479 = vsel %vm138, %v463, 0.0
    %480 = vadd.xlane.f32.xlu0 %v479
    %v481 = vpop.xlane.xlu0 %480
    %v482 = vlog2.pop %v466
    %v483 = vmul.f32 %v482, 0.6931472
    %v484 = vlog2.pop %v469
    %v485 = vmul.f32 %v484, 0.6931472
    %v486 = vlog2.pop %v472
    %v487 = vmul.f32 %v486, 0.6931472
    %v488 = vlog2.pop %v475
    %v489 = vmul.f32 %v488, 0.6931472
    %v490 = vlog2.pop %v478
    %v491 = vmul.f32 %v490, 0.6931472
    %v492 = vlog2.pop %v481
    %v493 = vmul.f32 %v492, 0.6931472
    %v494 = vsub.f32 %v446, %v483
    %v495 = vsub.f32 %v447, %v485
    %v496 = vsub.f32 %v448, %v487
    %v497 = vsub.f32 %v449, %v489
    %v498 = vsub.f32 %v450, %v491
    %v499 = vsub.f32 %v451, %v493
    %v500 = vsub.f32 %v410, %v494
    %v501 = vsub.f32 %v411, %v495
    %v502 = vsub.f32 %v412, %v496
    %v503 = vsub.f32 %v413, %v497
    %v504 = vsub.f32 %v414, %v498
    %v505 = vsub.f32 %v415, %v499
    %v506 = vmul.f32 %v417, %v500
    %v507 = vmul.f32 %v419, %v501
    %v508 = vmul.f32 %v421, %v502
    %v509 = vmul.f32 %v423, %v503
    %v510 = vmul.f32 %v425, %v504
    %v511 = vmul.f32 %v427, %v505
    %v512 = vsel %vm138, %v506, 0.0
    %513 = vadd.xlane.f32.xlu0 %v512
    %v514 = vpop.xlane.xlu0 %513
    %v515 = vsel %vm138, %v507, 0.0
    %516 = vadd.xlane.f32.xlu0 %v515
    %v517 = vpop.xlane.xlu0 %516
    %v518 = vsel %vm138, %v508, 0.0
    %519 = vadd.xlane.f32.xlu0 %v518
    %v520 = vpop.xlane.xlu0 %519
    %v521 = vsel %vm138, %v509, 0.0
    %522 = vadd.xlane.f32.xlu0 %v521
    %v523 = vpop.xlane.xlu0 %522
    %v524 = vsel %vm138, %v510, 0.0
    %525 = vadd.xlane.f32.xlu0 %v524
    %v526 = vpop.xlane.xlu0 %525
    %v527 = vsel %vm138, %v511, 0.0
    %528 = vadd.xlane.f32.xlu0 %v527
    %v529 = vpop.xlane.xlu0 %528
    %v530 = vmul.f32 %v514, %v54
    %v531 = vmul.f32 %v517, %v55
    %v532 = vmul.f32 %v520, %v56
    %v533 = vmul.f32 %v523, %v57
    %v534 = vmul.f32 %v526, %v58
    %v535 = vmul.f32 %v529, %v59
    %v536 = vsel %vm291, %v530, 0.0
    %v537 = vsel %vm291, %v531, 0.0
    %v538 = vadd.f32 %v536, %v537
    %v539 = vsel %vm291, %v532, 0.0
    %v540 = vadd.f32 %v538, %v539
    %v541 = vsel %vm291, %v533, 0.0
    %v542 = vadd.f32 %v540, %v541
    %v543 = vsel %vm291, %v534, 0.0
    %v544 = vadd.f32 %v542, %v543
    %v545 = vsel %vm291, %v535, 0.0
    %v546 = vadd.f32 %v544, %v545
    %547 = vadd.xlane.f32.xlu0 %v546
    %v548 = vpop.xlane.xlu0 %547
    %v549 = vrot.slane %v548, 4
    %v550 = vadd.f32 %v548, %v549
    %v551 = vrot.slane %v550, 2
    %v552 = vadd.f32 %v550, %v551
    %v553 = vrot.slane %v552, 1
    %v554 = vadd.f32 %v552, %v553
    %s555 = vtos %v554
    %v556 = vsub.f32 %v108, %v120
    %v557 = vsub.f32 %v109, %v121
    %v558 = vsub.f32 %v110, %v122
    %v559 = vsub.f32 %v111, %v123
    %v560 = vsub.f32 %v112, %v124
    %v561 = vsub.f32 %v113, %v125
    %v562 = vadd.f32 %v556, 1e-06
    %v563 = vadd.f32 %v557, 1e-06
    %v564 = vadd.f32 %v558, 1e-06
    %v565 = vadd.f32 %v559, 1e-06
    %v566 = vadd.f32 %v560, 1e-06
    %v567 = vadd.f32 %v561, 1e-06
    %v568 = vsub.f32 %v108, %v132
    %v569 = vsub.f32 %v109, %v133
    %v570 = vsub.f32 %v110, %v134
    %v571 = vsub.f32 %v111, %v135
    %v572 = vsub.f32 %v112, %v136
    %v573 = vsub.f32 %v113, %v137
    %v574 = vadd.f32 %v568, 1e-06
    %v575 = vadd.f32 %v569, 1e-06
    %v576 = vadd.f32 %v570, 1e-06
    %v577 = vadd.f32 %v571, 1e-06
    %v578 = vadd.f32 %v572, 1e-06
    %v579 = vadd.f32 %v573, 1e-06
    %v580 = vmul.f32 %v562, %v562
    %v581 = vmul.f32 %v563, %v563
    %v582 = vmul.f32 %v564, %v564
    %v583 = vmul.f32 %v565, %v565
    %v584 = vmul.f32 %v566, %v566
    %v585 = vmul.f32 %v567, %v567
    %vm586 = vcmask 261120
    %v587 = vsel %vm586, %v580, 0.0
    %588 = vadd.xlane.f32.xlu0 %v587
    %v589 = vpop.xlane.xlu0 %588
    %v590 = vsel %vm586, %v581, 0.0
    %591 = vadd.xlane.f32.xlu0 %v590
    %v592 = vpop.xlane.xlu0 %591
    %v593 = vsel %vm586, %v582, 0.0
    %594 = vadd.xlane.f32.xlu0 %v593
    %v595 = vpop.xlane.xlu0 %594
    %v596 = vsel %vm586, %v583, 0.0
    %597 = vadd.xlane.f32.xlu0 %v596
    %v598 = vpop.xlane.xlu0 %597
    %v599 = vsel %vm586, %v584, 0.0
    %600 = vadd.xlane.f32.xlu0 %v599
    %v601 = vpop.xlane.xlu0 %600
    %v602 = vsel %vm586, %v585, 0.0
    %603 = vadd.xlane.f32.xlu0 %v602
    %v604 = vpop.xlane.xlu0 %603
    %v605 = vrsqrt.pop %v589
    %v606 = vmul.f32 %v589, %v605
    %vm607 = vcmp.eq.f32.partialorder %v589, inf
    %v608 = vsel %vm607, %v589, %v606
    %vm609 = vcmp.eq.f32.partialorder %v589, 0.0
    %v610 = vand.u32 %v589, 2147483648
    %v611 = vsel %vm609, %v610, %v608
    %v612 = vrsqrt.pop %v592
    %v613 = vmul.f32 %v592, %v612
    %vm614 = vcmp.eq.f32.partialorder %v592, inf
    %v615 = vsel %vm614, %v592, %v613
    %vm616 = vcmp.eq.f32.partialorder %v592, 0.0
    %v617 = vand.u32 %v592, 2147483648
    %v618 = vsel %vm616, %v617, %v615
    %v619 = vrsqrt.pop %v595
    %v620 = vmul.f32 %v595, %v619
    %vm621 = vcmp.eq.f32.partialorder %v595, inf
    %v622 = vsel %vm621, %v595, %v620
    %vm623 = vcmp.eq.f32.partialorder %v595, 0.0
    %v624 = vand.u32 %v595, 2147483648
    %v625 = vsel %vm623, %v624, %v622
    %v626 = vrsqrt.pop %v598
    %v627 = vmul.f32 %v598, %v626
    %vm628 = vcmp.eq.f32.partialorder %v598, inf
    %v629 = vsel %vm628, %v598, %v627
    %vm630 = vcmp.eq.f32.partialorder %v598, 0.0
    %v631 = vand.u32 %v598, 2147483648
    %v632 = vsel %vm630, %v631, %v629
    %v633 = vrsqrt.pop %v601
    %v634 = vmul.f32 %v601, %v633
    %vm635 = vcmp.eq.f32.partialorder %v601, inf
    %v636 = vsel %vm635, %v601, %v634
    %vm637 = vcmp.eq.f32.partialorder %v601, 0.0
    %v638 = vand.u32 %v601, 2147483648
    %v639 = vsel %vm637, %v638, %v636
    %v640 = vrsqrt.pop %v604
    %v641 = vmul.f32 %v604, %v640
    %vm642 = vcmp.eq.f32.partialorder %v604, inf
    %v643 = vsel %vm642, %v604, %v641
    %vm644 = vcmp.eq.f32.partialorder %v604, 0.0
    %v645 = vand.u32 %v604, 2147483648
    %v646 = vsel %vm644, %v645, %v643
    %v647 = vmul.f32 %v574, %v574
    %v648 = vmul.f32 %v575, %v575
    %v649 = vmul.f32 %v576, %v576
    %v650 = vmul.f32 %v577, %v577
    %v651 = vmul.f32 %v578, %v578
    %v652 = vmul.f32 %v579, %v579
    %v653 = vsel %vm586, %v647, 0.0
    %654 = vadd.xlane.f32.xlu0 %v653
    %v655 = vpop.xlane.xlu0 %654
    %v656 = vsel %vm586, %v648, 0.0
    %657 = vadd.xlane.f32.xlu0 %v656
    %v658 = vpop.xlane.xlu0 %657
    %v659 = vsel %vm586, %v649, 0.0
    %660 = vadd.xlane.f32.xlu0 %v659
    %v661 = vpop.xlane.xlu0 %660
    %v662 = vsel %vm586, %v650, 0.0
    %663 = vadd.xlane.f32.xlu0 %v662
    %v664 = vpop.xlane.xlu0 %663
    %v665 = vsel %vm586, %v651, 0.0
    %666 = vadd.xlane.f32.xlu0 %v665
    %v667 = vpop.xlane.xlu0 %666
    %v668 = vsel %vm586, %v652, 0.0
    %669 = vadd.xlane.f32.xlu0 %v668
    %v670 = vpop.xlane.xlu0 %669
    %v671 = vrsqrt.pop %v655
    %v672 = vmul.f32 %v655, %v671
    %vm673 = vcmp.eq.f32.partialorder %v655, inf
    %v674 = vsel %vm673, %v655, %v672
    %vm675 = vcmp.eq.f32.partialorder %v655, 0.0
    %v676 = vand.u32 %v655, 2147483648
    %v677 = vsel %vm675, %v676, %v674
    %v678 = vrsqrt.pop %v658
    %v679 = vmul.f32 %v658, %v678
    %vm680 = vcmp.eq.f32.partialorder %v658, inf
    %v681 = vsel %vm680, %v658, %v679
    %vm682 = vcmp.eq.f32.partialorder %v658, 0.0
    %v683 = vand.u32 %v658, 2147483648
    %v684 = vsel %vm682, %v683, %v681
    %v685 = vrsqrt.pop %v661
    %v686 = vmul.f32 %v661, %v685
    %vm687 = vcmp.eq.f32.partialorder %v661, inf
    %v688 = vsel %vm687, %v661, %v686
    %vm689 = vcmp.eq.f32.partialorder %v661, 0.0
    %v690 = vand.u32 %v661, 2147483648
    %v691 = vsel %vm689, %v690, %v688
    %v692 = vrsqrt.pop %v664
    %v693 = vmul.f32 %v664, %v692
    %vm694 = vcmp.eq.f32.partialorder %v664, inf
    %v695 = vsel %vm694, %v664, %v693
    %vm696 = vcmp.eq.f32.partialorder %v664, 0.0
    %v697 = vand.u32 %v664, 2147483648
    %v698 = vsel %vm696, %v697, %v695
    %v699 = vrsqrt.pop %v667
    %v700 = vmul.f32 %v667, %v699
    %vm701 = vcmp.eq.f32.partialorder %v667, inf
    %v702 = vsel %vm701, %v667, %v700
    %vm703 = vcmp.eq.f32.partialorder %v667, 0.0
    %v704 = vand.u32 %v667, 2147483648
    %v705 = vsel %vm703, %v704, %v702
    %v706 = vrsqrt.pop %v670
    %v707 = vmul.f32 %v670, %v706
    %vm708 = vcmp.eq.f32.partialorder %v670, inf
    %v709 = vsel %vm708, %v670, %v707
    %vm710 = vcmp.eq.f32.partialorder %v670, 0.0
    %v711 = vand.u32 %v670, 2147483648
    %v712 = vsel %vm710, %v711, %v709
    %v713 = vsub.f32 %v611, %v677
    %v714 = vsub.f32 %v618, %v684
    %v715 = vsub.f32 %v625, %v691
    %v716 = vsub.f32 %v632, %v698
    %v717 = vsub.f32 %v639, %v705
    %v718 = vsub.f32 %v646, %v712
    %v719 = vadd.f32 %v713, 1.0
    %v720 = vadd.f32 %v714, 1.0
    %v721 = vadd.f32 %v715, 1.0
    %v722 = vadd.f32 %v716, 1.0
    %v723 = vadd.f32 %v717, 1.0
    %v724 = vadd.f32 %v718, 1.0
    %v725 = vmax.f32 %v719, 0.0
    %v726 = vmax.f32 %v720, 0.0
    %v727 = vmax.f32 %v721, 0.0
    %v728 = vmax.f32 %v722, 0.0
    %v729 = vmax.f32 %v723, 0.0
    %v730 = vmax.f32 %v724, 0.0
    %v731 = vmul.f32 %v725, %v54
    %v732 = vmul.f32 %v726, %v55
    %v733 = vmul.f32 %v727, %v56
    %v734 = vmul.f32 %v728, %v57
    %v735 = vmul.f32 %v729, %v58
    %v736 = vmul.f32 %v730, %v59
    %v737 = vsel %vm291, %v731, 0.0
    %v738 = vsel %vm291, %v732, 0.0
    %v739 = vadd.f32 %v737, %v738
    %v740 = vsel %vm291, %v733, 0.0
    %v741 = vadd.f32 %v739, %v740
    %v742 = vsel %vm291, %v734, 0.0
    %v743 = vadd.f32 %v741, %v742
    %v744 = vsel %vm291, %v735, 0.0
    %v745 = vadd.f32 %v743, %v744
    %v746 = vsel %vm291, %v736, 0.0
    %v747 = vadd.f32 %v745, %v746
    %748 = vadd.xlane.f32.xlu0 %v747
    %v749 = vpop.xlane.xlu0 %748
    %v750 = vrot.slane %v749, 4
    %v751 = vadd.f32 %v749, %v750
    %v752 = vrot.slane %v751, 2
    %v753 = vadd.f32 %v751, %v752
    %v754 = vrot.slane %v753, 1
    %v755 = vadd.f32 %v753, %v754
    %s756 = vtos %v755
    %vm757 = vcmp.eq.s32.totalorder %v212, 0
    %v758 = vsel %vm757, 1, 0
    %v759 = vcvt.s32.f32 %v758
    %v760 = vstv %s311
    %v761 = vmul.f32 %v760, %v759
    %vm762 = vcmp.eq.s32.totalorder %v212, 1
    %v763 = vsel %vm762, 1, 0
    %v764 = vcvt.s32.f32 %v763
    %v765 = vstv %s343
    %v766 = vmul.f32 %v765, %v764
    %v767 = vadd.f32 %v761, %v766
    %vm768 = vcmp.eq.s32.totalorder %v212, 2
    %v769 = vsel %vm768, 1, 0
    %v770 = vcvt.s32.f32 %v769
    %v771 = vstv %s555
    %v772 = vmul.f32 %v771, %v770
    %v773 = vadd.f32 %v767, %v772
    %vm774 = vcmp.eq.s32.totalorder %v212, 3
    %v775 = vsel %vm774, 1, 0
    %v776 = vcvt.s32.f32 %v775
    %v777 = vstv %s756
    %v778 = vmul.f32 %v777, %v776
    %v779 = vadd.f32 %v773, %v778
    %780 = vst [vmem:[#allocation2] sm:$0x1] %v779
    // Predicated region
    $region30: #{tpu_custom_call.1} parent=1 // pred_check
      _
    $region31: #{tpu_custom_call.1} parent=1 // pred_check_branch
      %782 = sbr.rel (0) target = $region33
    $region32: #{tpu_custom_call.1} parent=1 // pred_region
      %s784 = ssub.s32 16, 16
      %785 = vsyncadd [#allocation3], %s784
      %s787 = sshll.u32 [#allocation2], 4
      %s788 = int_to_ptr.vmem [resolvable:$true] %s787
      %790 = dma.vmem_to_hbm [thread:$0]  %s788, 16, %s7, [#allocation3]
    $region33: #{tpu_custom_call.1} parent=1 // pred_fallthru
      _
    // Predicated region
    $region34: #{tpu_custom_call.1} parent=1 // pred_check
      _
    $region35: #{tpu_custom_call.1} parent=1 // pred_check_branch
      %792 = sbr.rel (0) target = $region37
    $region36: #{tpu_custom_call.1} parent=1 // pred_region
      %793 = dma.done [#allocation3], 16
    $region37: #{tpu_custom_call.1} parent=1 // pred_fallthru
      _
    %794 = vsyncpa [#allocation3], 1

</llo_original>
